<compile_context>
chip_gen: v5e
topology: v5e:2x2
jax: 0.10.0
libtpu: 0.0.40
codegen_flags: <defaults>
</compile_context>

<pallas_src>
import functools

import jax
import jax.numpy as jnp
from jax.experimental import pallas as pl
from jax.experimental.pallas import tpu as pltpu


def _cdiv(a, b):
    return -(-a // b)


def _ce_kernel(tgt_ref, x_ref, out_ref, m_ref, s_ref, trow_ref, acc_ref, *,
               bt, num_classes, tc, tl, num_l_tiles, num_c_tiles, l_valid,
               bf16_exp):
    g = pl.program_id(0)    # batch group          ("parallel")
    lt = pl.program_id(1)   # spatial (L) tile     ("arbitrary", reduction)
    ct = pl.program_id(2)   # class (C) chunk      ("arbitrary", online LSE)

    @pl.when(jnp.logical_and(lt == 0, ct == 0))
    def _():
        acc_ref[...] = jnp.zeros_like(acc_ref)

    @pl.when(ct == 0)
    def _():
        m_ref[...] = jnp.full_like(m_ref, -jnp.inf)
        s_ref[...] = jnp.zeros_like(s_ref)
        trow_ref[...] = jnp.zeros_like(trow_ref)

    # (bt, tc, tl) native dtype -> f32 for the LSE math.
    x = x_ref[...].astype(jnp.float32)
    if num_classes % tc != 0:
        # Mask the padded classes of the last (partial) C chunk.
        cls = jax.lax.broadcasted_iota(jnp.int32, (1, tc, 1), 1) + ct * tc
        x = jnp.where(cls < num_classes, x, -jnp.inf)

    # Online (flash-style) log-sum-exp across C chunks.
    chunk_max = jnp.max(x, axis=1)                            # (bt, tl)
    m_new = jnp.maximum(m_ref[...], chunk_max)                # (bt, tl)
    alpha = jnp.exp(m_ref[...] - m_new)                       # rescale old sum
    shifted = x - m_new[:, None, :]
    if bf16_exp:
        # Optional v6e/v7x-only path: bf16 EUP exp ~2x throughput; sum in f32.
        e = jnp.exp(shifted.astype(jnp.bfloat16)).astype(jnp.float32)
    else:
        e = jnp.exp(shifted)
    s_ref[...] = alpha * s_ref[...] + jnp.sum(e, axis=1)
    m_ref[...] = m_new

    # Gather the target-class row(s) that live in this C chunk.
    # NOTE: out-of-range target ids are clamped to [0, C-1] (the reference
    # module has no ignore_index either; an unclamped id would be an unchecked
    # OOB VMEM read).
    gathered = jnp.zeros((1, tl), dtype=jnp.float32)
    for ib in range(bt):  # bt is small and static
        t = tgt_ref[g * bt + ib]
        t = jnp.minimum(jnp.maximum(t, 0), num_classes - 1)
        in_chunk = jnp.logical_and(t >= ct * tc, t < (ct + 1) * tc)
        tloc = jnp.minimum(jnp.maximum(t - ct * tc, 0), tc - 1)
        row = x_ref[ib, pl.ds(tloc, 1), :].astype(jnp.float32)   # (1, tl)
        gathered = gathered + jnp.where(in_chunk, row, 0.0)
    trow_ref[...] += gathered

    @pl.when(ct == num_c_tiles - 1)
    def _():
        lse = jnp.log(s_ref[...]) + m_ref[...]                        # (bt, tl)
        partial = jnp.sum(lse, axis=0, keepdims=True) - trow_ref[...]  # (1, tl)
        if num_l_tiles * tl != l_valid:
            # Mask the padded lanes of the last (partial) L tile.
            lane = jax.lax.broadcasted_iota(jnp.int32, (1, tl), 1) + lt * tl
            partial = jnp.where(lane < l_valid, partial, 0.0)
        acc_ref[...] += partial

    @pl.when(jnp.logical_and(lt == num_l_tiles - 1, ct == num_c_tiles - 1))
    def _():
        total = jnp.sum(acc_ref[...])               # one XLU reduce per group
        out_ref[...] = jnp.full(out_ref.shape, total, dtype=out_ref.dtype)


def _choose_tiles(B, C, L, itemsize, *, block_budget=8 << 20, max_bt=8):
    """Pick (bt, tc, tl) so the input block bt*tc*tl*itemsize <= block_budget."""
    sub = max(8, 32 // itemsize)      # sublane multiple: f32->8, bf16->16, i8->32

    # --- class axis: keep it whole unless even a 128-lane tile is too big.
    if C * 128 * itemsize <= block_budget // 2:
        tc = C
    else:
        # Tile classes (online LSE), leaving room for >=256-wide lane tiles.
        tc = max(sub, (block_budget // (2 * 256 * itemsize)) // sub * sub)
        tc = min(tc, _cdiv(C, sub) * sub)
    nc = _cdiv(C, tc)

    # --- spatial axis: biggest 128-multiple tile within budget; masked tail.
    max_tl = max(128, (block_budget // (tc * itemsize)) // 128 * 128)
    if L <= max_tl:
        tl = L                        # full extent: no alignment requirement
    else:
        tl = max_tl
        best = 0                      # prefer an exact divisor (no masked tail)
        t = 128
        while t <= max_tl:
            if L % t == 0:
                best = t
            t += 128
        if best >= max_tl // 2:
            tl = best
    nl = _cdiv(L, tl)

    # --- batch axis: pack small samples, but keep >= 2 "parallel" groups
    #     whenever B >= 2 (v7x has 2 TensorCores).
    bt_cap = min(max_bt, max(1, B // 2))
    bt = 1
    for cand in range(1, bt_cap + 1):
        if B % cand == 0 and cand * tc * tl * itemsize <= block_budget:
            bt = cand
    g = B // bt
    return bt, g, tc, nc, tl, nl


def cross_entropy_loss(inputs, targets, *, block_budget=8 << 20,
                       bf16_exp=False):
    """inputs: (B, C, *spatial) float; targets: (B,) int class ids."""
    B, C = inputs.shape[0], inputs.shape[1]
    x = inputs.reshape(B, C, -1)          # native dtype; no f32 copy in HBM
    L = x.shape[2]
    targets = targets.astype(jnp.int32)
    itemsize = jnp.dtype(x.dtype).itemsize

    bt, g, tc, nc, tl, nl = _choose_tiles(B, C, L, itemsize,
                                          block_budget=block_budget)
    # TODO(synk): when B == 1 (g == 1), split the L axis into 2 "parallel"
    # halves with separate output tiles so both v7x TensorCores get work.
    # TODO(synk): small-C sublane packing (pack bt*C into sublanes when C < 8)
    # for the compute-bound (v7x / bf16) regime.

    kernel = functools.partial(
        _ce_kernel, bt=bt, num_classes=C, tc=tc, tl=tl,
        num_l_tiles=nl, num_c_tiles=nc, l_valid=L, bf16_exp=bf16_exp)

    block_bytes = bt * tc * tl * itemsize
    # ~2x block (double buffer) + scratch + margin, capped for v7x's 64 MiB.
    vmem_limit = min(48 << 20, max(32 << 20, 2 * block_bytes + (8 << 20)))

    cost = pl.CostEstimate(
        flops=6 * B * C * L,
        transcendentals=B * C * L + 2 * B * L * nc,
        bytes_accessed=B * C * L * itemsize + g * 8 * 128 * 4 + B * 4,
    )

    out = pl.pallas_call(
        kernel,
        out_shape=jax.ShapeDtypeStruct((g, 8, 128), jnp.float32),
        grid_spec=pltpu.PrefetchScalarGridSpec(
            num_scalar_prefetch=1,                    # targets -> SMEM
            grid=(g, nl, nc),                         # reduction axes last
            in_specs=[
                pl.BlockSpec((bt, tc, tl),
                             lambda gi, li, ci, tgt: (gi, ci, li)),
            ],
            out_specs=pl.BlockSpec((1, 8, 128),
                                   lambda gi, li, ci, tgt: (gi, 0, 0)),
            scratch_shapes=[
                pltpu.VMEM((bt, tl), jnp.float32),    # running max  m
                pltpu.VMEM((bt, tl), jnp.float32),    # running sumexp s
                pltpu.VMEM((1, tl), jnp.float32),     # sum_b x[b, t_b, :]
                pltpu.VMEM((1, tl), jnp.float32),     # per-lane loss accum
            ],
        ),
        compiler_params=pltpu.CompilerParams(
            dimension_semantics=("parallel", "arbitrary", "arbitrary"),
            vmem_limit_bytes=vmem_limit,
        ),
        cost_estimate=cost,
    )(targets, x)

    # Each group's total is broadcast over its (8,128) output tile.
    return jnp.sum(out[:, 0, 0]) / (B * L)


def _reference(inputs, targets):
    B, C = inputs.shape[0], inputs.shape[1]
    x = inputs.reshape(B, C, -1).astype(jnp.float32)
    L = x.shape[2]
    log_probs = jax.nn.log_softmax(x, axis=1)
    onehot = jax.nn.one_hot(targets, C, dtype=jnp.float32)[:, :, None]
    return jnp.sum(jnp.mean(-onehot * log_probs, axis=0)) / L


if __name__ == "__main__":
    key = jax.random.PRNGKey(0)
    k1, k2, k3, k4 = jax.random.split(key, 4)

    # Primary check: shapes implied by the module (B, C, H, W).
    B, C, H, W = 2, 4, 16, 16
    inputs = jax.random.normal(k1, (B, C, H, W), dtype=jnp.float32)
    targets = jax.random.randint(k2, (B,), 0, C, dtype=jnp.int32)
    loss = jax.block_until_ready(cross_entropy_loss(inputs, targets))
    ref = _reference(inputs, targets)
    assert jnp.allclose(loss, ref, atol=1e-5, rtol=1e-5), (loss, ref)

    # Secondary check: force the tiled-C (online LSE) + masked-tail-L code
    # paths with a tiny block budget (same code that vocab-scale C or huge
    # non-128-multiple L would take at the default 8 MB budget).
    B2, C2, H2, W2 = 3, 20, 20, 40
    inputs2 = jax.random.normal(k3, (B2, C2, H2, W2), dtype=jnp.float32)
    targets2 = jax.random.randint(k4, (B2,), 0, C2, dtype=jnp.int32)
    loss2 = jax.block_until_ready(
        cross_entropy_loss(inputs2, targets2, block_budget=16 << 10))
    ref2 = _reference(inputs2, targets2)
    assert jnp.allclose(loss2, ref2, atol=1e-5, rtol=1e-5), (loss2, ref2)

    print("KERNEL_OK")
</pallas_src>

<mosaic_0001>
module attributes {stable_mosaic.version = 11 : i64} {
  func.func @_ce_kernel(%arg0: i32, %arg1: i32, %arg2: i32, %arg3: memref<2xi32, #tpu.memory_space<smem>>, %arg4: memref<1x4x256xf32, #tpu.memory_space<vmem>>, %arg5: memref<1x8x128xf32, #tpu.memory_space<vmem>>, %arg6: memref<1x256xf32, #tpu.memory_space<vmem>>, %arg7: memref<1x256xf32, #tpu.memory_space<vmem>>, %arg8: memref<1x256xf32, #tpu.memory_space<vmem>>, %arg9: memref<1x256xf32, #tpu.memory_space<vmem>>) attributes {dimension_semantics = [#tpu.dimension_semantics<parallel>, #tpu.dimension_semantics<arbitrary>, #tpu.dimension_semantics<arbitrary>], iteration_bounds = array<i64: 2, 1, 1>, scalar_prefetch = 1 : i64, scratch_operands = 4 : i64, tpu.core_type = #tpu.core_type<tc>, window_params = [{transform_indices = @transform_0, window_bounds = array<i64: 1, 4, 256>}, {transform_indices = @transform_1, window_bounds = array<i64: 1, 8, 128>}]} {
    %c0_i32 = arith.constant 0 : i32
    %0 = arith.cmpi eq, %arg1, %c0_i32 : i32
    %c0_i32_0 = arith.constant 0 : i32
    %1 = arith.cmpi eq, %arg2, %c0_i32_0 : i32
    %2 = arith.andi %0, %1 : i1
    %3 = arith.extui %2 : i1 to i32
    %c0_i32_1 = arith.constant 0 : i32
    %4 = arith.cmpi ne, %3, %c0_i32_1 : i32
    scf.if %4 {
      %cst_37 = arith.constant 0.000000e+00 : f32
      %59 = vector.broadcast %cst_37 : f32 to vector<1x256xf32>
      %c0_38 = arith.constant 0 : index
      %c0_39 = arith.constant 0 : index
      %60 = vector.load %arg9[%c0_38, %c0_39] : memref<1x256xf32, #tpu.memory_space<vmem>>, vector<1x256xf32>
      tpu.vector_store %arg9[%c0_38, %c0_39], %59 {strides = array<i32>} : memref<1x256xf32, #tpu.memory_space<vmem>>, vector<1x256xf32>,
    } else {
    }
    %c0_i32_2 = arith.constant 0 : i32
    %5 = arith.cmpi eq, %arg2, %c0_i32_2 : i32
    %6 = arith.extui %5 : i1 to i32
    %c0_i32_3 = arith.constant 0 : i32
    %7 = arith.cmpi ne, %6, %c0_i32_3 : i32
    scf.if %7 {
      %cst_37 = arith.constant 0xFF800000 : f32
      %59 = vector.broadcast %cst_37 : f32 to vector<1x256xf32>
      %c0_38 = arith.constant 0 : index
      %c0_39 = arith.constant 0 : index
      %60 = vector.load %arg6[%c0_38, %c0_39] : memref<1x256xf32, #tpu.memory_space<vmem>>, vector<1x256xf32>
      tpu.vector_store %arg6[%c0_38, %c0_39], %59 {strides = array<i32>} : memref<1x256xf32, #tpu.memory_space<vmem>>, vector<1x256xf32>,
      %cst_40 = arith.constant 0.000000e+00 : f32
      %61 = vector.broadcast %cst_40 : f32 to vector<1x256xf32>
      %c0_41 = arith.constant 0 : index
      %c0_42 = arith.constant 0 : index
      %62 = vector.load %arg7[%c0_41, %c0_42] : memref<1x256xf32, #tpu.memory_space<vmem>>, vector<1x256xf32>
      tpu.vector_store %arg7[%c0_41, %c0_42], %61 {strides = array<i32>} : memref<1x256xf32, #tpu.memory_space<vmem>>, vector<1x256xf32>,
      %cst_43 = arith.constant 0.000000e+00 : f32
      %63 = vector.broadcast %cst_43 : f32 to vector<1x256xf32>
      %c0_44 = arith.constant 0 : index
      %c0_45 = arith.constant 0 : index
      %64 = vector.load %arg8[%c0_44, %c0_45] : memref<1x256xf32, #tpu.memory_space<vmem>>, vector<1x256xf32>
      tpu.vector_store %arg8[%c0_44, %c0_45], %63 {strides = array<i32>} : memref<1x256xf32, #tpu.memory_space<vmem>>, vector<1x256xf32>,
    } else {
    }
    %c0 = arith.constant 0 : index
    %c0_4 = arith.constant 0 : index
    %c0_5 = arith.constant 0 : index
    %8 = vector.load %arg4[%c0, %c0_4, %c0_5] : memref<1x4x256xf32, #tpu.memory_space<vmem>>, vector<1x4x256xf32>
    %cst = arith.constant dense<0xFF800000> : vector<1x256xf32>
    %9 = vector.multi_reduction <maximumf>, %8, %cst [1] : vector<1x4x256xf32> to vector<1x256xf32>
    %c0_6 = arith.constant 0 : index
    %c0_7 = arith.constant 0 : index
    %10 = vector.load %arg6[%c0_6, %c0_7] : memref<1x256xf32, #tpu.memory_space<vmem>>, vector<1x256xf32>
    %11 = arith.maximumf %10, %9 : vector<1x256xf32>
    %c0_8 = arith.constant 0 : index
    %c0_9 = arith.constant 0 : index
    %12 = vector.load %arg6[%c0_8, %c0_9] : memref<1x256xf32, #tpu.memory_space<vmem>>, vector<1x256xf32>
    %13 = arith.subf %12, %11 : vector<1x256xf32>
    %14 = math.exp %13 : vector<1x256xf32>
    %15 = vector.shape_cast %11 : vector<1x256xf32> to vector<1x1x256xf32>
    %16 = vector.broadcast %15 : vector<1x1x256xf32> to vector<1x4x256xf32>
    %17 = arith.subf %8, %16 : vector<1x4x256xf32>
    %18 = math.exp %17 : vector<1x4x256xf32>
    %c0_10 = arith.constant 0 : index
    %c0_11 = arith.constant 0 : index
    %19 = vector.load %arg7[%c0_10, %c0_11] : memref<1x256xf32, #tpu.memory_space<vmem>>, vector<1x256xf32>
    %20 = arith.mulf %14, %19 : vector<1x256xf32>
    %cst_12 = arith.constant dense<0.000000e+00> : vector<1x256xf32>
    %21 = vector.multi_reduction <add>, %18, %cst_12 [1] : vector<1x4x256xf32> to vector<1x256xf32>
    %22 = arith.addf %20, %21 : vector<1x256xf32>
    %c0_13 = arith.constant 0 : index
    %c0_14 = arith.constant 0 : index
    %23 = vector.load %arg7[%c0_13, %c0_14] : memref<1x256xf32, #tpu.memory_space<vmem>>, vector<1x256xf32>
    tpu.vector_store %arg7[%c0_13, %c0_14], %22 {strides = array<i32>} : memref<1x256xf32, #tpu.memory_space<vmem>>, vector<1x256xf32>,
    %c0_15 = arith.constant 0 : index
    %c0_16 = arith.constant 0 : index
    %24 = vector.load %arg6[%c0_15, %c0_16] : memref<1x256xf32, #tpu.memory_space<vmem>>, vector<1x256xf32>
    tpu.vector_store %arg6[%c0_15, %c0_16], %11 {strides = array<i32>} : memref<1x256xf32, #tpu.memory_space<vmem>>, vector<1x256xf32>,
    %cst_17 = arith.constant 0.000000e+00 : f32
    %25 = vector.broadcast %cst_17 : f32 to vector<1x256xf32>
    %c1_i32 = arith.constant 1 : i32
    %26 = arith.muli %arg0, %c1_i32 : i32
    %c0_i32_18 = arith.constant 0 : i32
    %27 = arith.addi %26, %c0_i32_18 : i32
    %28 = arith.index_cast %27 : i32 to index
    %29 = memref.load %arg3[%28] : memref<2xi32, #tpu.memory_space<smem>>
    %c0_i32_19 = arith.constant 0 : i32
    %30 = arith.maxsi %29, %c0_i32_19 : i32
    %c3_i32 = arith.constant 3 : i32
    %31 = arith.minsi %30, %c3_i32 : i32
    %c4_i32 = arith.constant 4 : i32
    %32 = arith.muli %arg2, %c4_i32 : i32
    %33 = arith.cmpi sge, %31, %32 : i32
    %c1_i32_20 = arith.constant 1 : i32
    %34 = arith.addi %arg2, %c1_i32_20 : i32
    %c4_i32_21 = arith.constant 4 : i32
    %35 = arith.muli %34, %c4_i32_21 : i32
    %36 = arith.cmpi slt, %31, %35 : i32
    %37 = arith.andi %33, %36 : i1
    %c4_i32_22 = arith.constant 4 : i32
    %38 = arith.muli %arg2, %c4_i32_22 : i32
    %39 = arith.subi %31, %38 : i32
    %c0_i32_23 = arith.constant 0 : i32
    %40 = arith.maxsi %39, %c0_i32_23 : i32
    %c3_i32_24 = arith.constant 3 : i32
    %41 = arith.minsi %40, %c3_i32_24 : i32
    %c0_25 = arith.constant 0 : index
    %42 = arith.index_cast %41 : i32 to index
    %c0_26 = arith.constant 0 : index
    %43 = vector.load %arg4[%c0_25, %42, %c0_26] : memref<1x4x256xf32, #tpu.memory_space<vmem>>, vector<1x1x256xf32>
    %44 = vector.shape_cast %43 : vector<1x1x256xf32> to vector<1x256xf32>
    %cst_27 = arith.constant 0.000000e+00 : f32
    %45 = vector.broadcast %cst_27 : f32 to vector<1x256xf32>
    %46 = arith.select %37, %44, %45 : vector<1x256xf32>
    %47 = arith.addf %25, %46 : vector<1x256xf32>
    %c0_28 = arith.constant 0 : index
    %c0_29 = arith.constant 0 : index
    %48 = vector.load %arg8[%c0_28, %c0_29] : memref<1x256xf32, #tpu.memory_space<vmem>>, vector<1x256xf32>
    %49 = arith.addf %48, %47 : vector<1x256xf32>
    %c0_30 = arith.constant 0 : index
    %c0_31 = arith.constant 0 : index
    %50 = vector.load %arg8[%c0_30, %c0_31] : memref<1x256xf32, #tpu.memory_space<vmem>>, vector<1x256xf32>
    tpu.vector_store %arg8[%c0_30, %c0_31], %49 {strides = array<i32>} : memref<1x256xf32, #tpu.memory_space<vmem>>, vector<1x256xf32>,
    %c0_i32_32 = arith.constant 0 : i32
    %51 = arith.cmpi eq, %arg2, %c0_i32_32 : i32
    %52 = arith.extui %51 : i1 to i32
    %c0_i32_33 = arith.constant 0 : i32
    %53 = arith.cmpi ne, %52, %c0_i32_33 : i32
    scf.if %53 {
      %c0_37 = arith.constant 0 : index
      %c0_38 = arith.constant 0 : index
      %59 = vector.load %arg7[%c0_37, %c0_38] : memref<1x256xf32, #tpu.memory_space<vmem>>, vector<1x256xf32>
      %60 = math.log %59 : vector<1x256xf32>
      %c0_39 = arith.constant 0 : index
      %c0_40 = arith.constant 0 : index
      %61 = vector.load %arg6[%c0_39, %c0_40] : memref<1x256xf32, #tpu.memory_space<vmem>>, vector<1x256xf32>
      %62 = arith.addf %60, %61 : vector<1x256xf32>
      %cst_41 = arith.constant dense<0.000000e+00> : vector<256xf32>
      %63 = vector.multi_reduction <add>, %62, %cst_41 [0] : vector<1x256xf32> to vector<256xf32>
      %64 = vector.shape_cast %63 : vector<256xf32> to vector<1x256xf32>
      %c0_42 = arith.constant 0 : index
      %c0_43 = arith.constant 0 : index
      %65 = vector.load %arg8[%c0_42, %c0_43] : memref<1x256xf32, #tpu.memory_space<vmem>>, vector<1x256xf32>
      %66 = arith.subf %64, %65 : vector<1x256xf32>
      %c0_44 = arith.constant 0 : index
      %c0_45 = arith.constant 0 : index
      %67 = vector.load %arg9[%c0_44, %c0_45] : memref<1x256xf32, #tpu.memory_space<vmem>>, vector<1x256xf32>
      %68 = arith.addf %67, %66 : vector<1x256xf32>
      %c0_46 = arith.constant 0 : index
      %c0_47 = arith.constant 0 : index
      %69 = vector.load %arg9[%c0_46, %c0_47] : memref<1x256xf32, #tpu.memory_space<vmem>>, vector<1x256xf32>
      tpu.vector_store %arg9[%c0_46, %c0_47], %68 {strides = array<i32>} : memref<1x256xf32, #tpu.memory_space<vmem>>, vector<1x256xf32>,
    } else {
    }
    %c0_i32_34 = arith.constant 0 : i32
    %54 = arith.cmpi eq, %arg1, %c0_i32_34 : i32
    %c0_i32_35 = arith.constant 0 : i32
    %55 = arith.cmpi eq, %arg2, %c0_i32_35 : i32
    %56 = arith.andi %54, %55 : i1
    %57 = arith.extui %56 : i1 to i32
    %c0_i32_36 = arith.constant 0 : i32
    %58 = arith.cmpi ne, %57, %c0_i32_36 : i32
    scf.if %58 {
      %c0_37 = arith.constant 0 : index
      %c0_38 = arith.constant 0 : index
      %59 = vector.load %arg9[%c0_37, %c0_38] : memref<1x256xf32, #tpu.memory_space<vmem>>, vector<1x256xf32>
      %60 = vector.shape_cast %59 : vector<1x256xf32> to vector<1x1x256xf32>
      %cst_39 = arith.constant dense<0.000000e+00> : vector<1xf32>
      %61 = vector.multi_reduction <add>, %60, %cst_39 [1, 2] : vector<1x1x256xf32> to vector<1xf32>
      %62 = vector.shape_cast %61 : vector<1xf32> to vector<1x1x1xf32>
      %63 = vector.extract %62[0, 0, 0] : f32 from vector<1x1x1xf32>
      %64 = vector.broadcast %63 : f32 to vector<1x8x128xf32>
      %c0_40 = arith.constant 0 : index
      %c0_41 = arith.constant 0 : index
      %c0_42 = arith.constant 0 : index
      %65 = vector.load %arg5[%c0_40, %c0_41, %c0_42] : memref<1x8x128xf32, #tpu.memory_space<vmem>>, vector<1x8x128xf32>
      tpu.vector_store %arg5[%c0_40, %c0_41, %c0_42], %64 {strides = array<i32>} : memref<1x8x128xf32, #tpu.memory_space<vmem>>, vector<1x8x128xf32>,
    } else {
    }
    return
  }
  func.func @transform_0(%arg0: i32, %arg1: i32, %arg2: i32, %arg3: memref<2xi32, #tpu.memory_space<smem>>) -> (i32, i32, i32) {
    %c0_i32 = arith.constant 0 : i32
    return %arg0, %arg2, %arg1 : i32, i32, i32
  }
  func.func @transform_1(%arg0: i32, %arg1: i32, %arg2: i32, %arg3: memref<2xi32, #tpu.memory_space<smem>>) -> (i32, i32, i32) {
    %c0_i32 = arith.constant 0 : i32
    %c0_i32_0 = arith.constant 0 : i32
    %c0_i32_1 = arith.constant 0 : i32
    return %arg0, %c0_i32, %c0_i32_0 : i32, i32, i32
  }
}

</mosaic_0001>

<llo_original>
// kernel: tpu_custom_call.1
$region0: #{tpu_custom_call.1}
  #allocation0 [shape = 'u32[]', space=smem, size = 0x4, offset = 0x4, fixed_abs, tag = 'smem constant byte address 0x4 - core index']
  #allocation1 [shape = 'u32[72,128]{1,0:T(1,128)}', space=vmem, size = 0x9000, scoped, tag = 'internal scratch']
  #allocation2 [shape = 'f32[1,256]{1,0:T(1,128)}', space=vmem, size = 0x400, scoped, tag = 'scratch operand']
  #allocation3 [shape = 'f32[1,256]{1,0:T(1,128)}', space=vmem, size = 0x400, scoped, tag = 'scratch operand']
  #allocation4 [shape = 'f32[1,256]{1,0:T(1,128)}', space=vmem, size = 0x400, scoped, tag = 'scratch operand']
  #allocation5 [shape = 'f32[1,256]{1,0:T(1,128)}', space=vmem, size = 0x400, scoped, tag = 'scratch operand']
  #allocation6 [shape = 's32[1]{0}', space=sflag, size = 0x4, scoped, tag = 'scoped memory for tpu_custom_call.1']
  #allocation7 [shape = 'u8[512]{0}', space=smem, size = 0x200, scoped, tag = 'prefetched SMEM operand 0']
  %s0 = inlined_call_operand.hbm [shape: s32[2], index: 0, kind: input, shape index: {}]
  %s1 = inlined_call_operand.hbm [shape: f32[2,4,256], index: 1, kind: input, shape index: {}]
  %s2 = inlined_call_operand.hbm [shape: f32[2,8,128], index: 2, kind: output, shape index: {}]
  %s3 = sld [smem:[#allocation0]]
  $region57: #{tpu_custom_call.1} parent=0
    _
  %s5 = ssub.s32 1, %s3
  %s6 = scalar_select 0, %s5, %s3
  %s8 = sshll.u32 %s0, 4
  %s9 = int_to_ptr.hbm [resolvable:$true] %s8
  %11 = dma.hbm_to_smem %s9, 16, [#allocation7], [#allocation6]
  %13 = dma.done [#allocation6], 16
  %14 = sfence
  $region1: #{tpu_custom_call.1} parent=0
    #allocation8 [shape = 'u8[8192]{0}', space=vmem, size = 0x2000, scoped, tag = 'input window, operand 1']
    #allocation9 [shape = 's32[2]{0}', space=sflag, size = 0x8, scoped, tag = 'scoped memory for tpu_custom_call.1']
    #allocation10 [shape = 's32[2]{0}', space=sflag, size = 0x8, scoped, tag = 'scoped memory for tpu_custom_call.1']
    #allocation11 [shape = 'u8[8192]{0}', space=vmem, size = 0x2000, scoped, tag = 'output window, operand 0']
    %15 = vsyncpa [#allocation9], 0
    %s16 = scalar_lea.sflag [#allocation9], 1
    %17 = vsyncpa %s16, 0
    %18 = vsyncpa [#allocation10], 0
    %s19 = scalar_lea.sflag [#allocation10], 1
    %20 = vsyncpa %s19, 0
    loop: start=0, step=1, limit=4
    $region2: #{tpu_custom_call.1} parent=1 // loop_pre_header
      _
    $region3: #{tpu_custom_call.1} parent=1 // loop_header
      %s22 = sphi 0, %s26
      %p23 = scmp.ge.s32.totalorder %s22, 4
      %s29 = sphi 0, %s48
      %s30 = sphi 0, %s44
      %s31 = sphi 0, %s40
      %s32 = sphi 0, %s29
      %s33 = sphi 0, %s30
      %s34 = sphi 0, %s31
      %s35 = sphi 0, %s32
      %s36 = sphi 0, %s33
      %s37 = sphi 0, %s34
      %s55 = sphi 0, %s57
      %s58 = sphi 0, %s55
      %s59 = sphi 0, %s58
      %s75 = sphi 0, %s59
      %s81 = sphi 0, %s83
      %s84 = sphi 0, %s81
      %s85 = sphi 0, %s84
      %s101 = sphi 0, %s85
    $region4: #{tpu_custom_call.1} parent=1 // loop_header_branch
      %25 = sbr.rel (%p23) target = $region8
    $region5: #{tpu_custom_call.1} parent=1 // loop_body
      %s27 = ssub.s32 %s22, 1
      %s28 = ssub.s32 %s22, 2
      %s38 = sadd.s32 1, %s31
      %p39 = scmp.ge.s32.totalorder %s38, 1
      %s40 = scalar_select %p39, 0, %s38
      %s41 = sadd.s32 1, %s30
      %s42 = scalar_select %p39, %s41, %s30
      %p43 = scmp.ge.s32.totalorder %s42, 1
      %s44 = scalar_select %p43, 0, %s42
      %s45 = sadd.s32 1, %s29
      %s46 = scalar_select %p43, %s45, %s29
      %p47 = scmp.ge.s32.totalorder %s46, 2
      %s48 = scalar_select %p47, 0, %s46
      %s49 = ssub.s32 %s29, %s48
      %s50 = ssub.s32 %s31, %s40
      %s51 = sor.u32 %s49, %s50
      %s52 = ssub.s32 %s30, %s44
      %s53 = sor.u32 %s51, %s52
      %p54 = scmp.eq.s32.totalorder %s53, 0
      %s56 = sadd.s32 %s55, 1
      %s57 = scalar_select %p54, %s55, %s56
      %p60 = pneg %p54
      %p61 = scmp.eq.s32.totalorder %s22, 1
      %p62 = por %p60, %p61
      %p63 = scmp.ne.s32.totalorder %s55, %s58
      %p64 = scmp.eq.s32.totalorder %s22, 0
      %p65 = por %p63, %p64
      %p66 = scmp.ne.s32.totalorder %s55, %s58
      %p67 = scmp.eq.s32.totalorder %s27, 1
      %p68 = por %p66, %p67
      %p69 = scmp.ne.s32.totalorder %s58, %s59
      %p70 = scmp.eq.s32.totalorder %s27, 0
      %p71 = por %p69, %p70
      %p72 = scmp.ne.s32.totalorder %s58, %s59
      %p73 = scmp.eq.s32.totalorder %s28, 1
      %p74 = por %p72, %p73
      %p76 = scmp.ne.s32.totalorder %s59, %s75
      %p77 = scmp.eq.s32.totalorder %s28, 0
      %p78 = por %p76, %p77
      %s79 = ssub.s32 %s29, %s48
      %p80 = scmp.eq.s32.totalorder %s79, 0
      %s82 = sadd.s32 %s81, 1
      %s83 = scalar_select %p80, %s81, %s82
      %p86 = pneg %p80
      %p87 = scmp.eq.s32.totalorder %s22, 1
      %p88 = por %p86, %p87
      %p89 = scmp.ne.s32.totalorder %s81, %s84
      %p90 = scmp.eq.s32.totalorder %s22, 0
      %p91 = por %p89, %p90
      %p92 = scmp.ne.s32.totalorder %s81, %s84
      %p93 = scmp.eq.s32.totalorder %s27, 1
      %p94 = por %p92, %p93
      %p95 = scmp.ne.s32.totalorder %s84, %s85
      %p96 = scmp.eq.s32.totalorder %s27, 0
      %p97 = por %p95, %p96
      %p98 = scmp.ne.s32.totalorder %s84, %s85
      %p99 = scmp.eq.s32.totalorder %s28, 1
      %p100 = por %p98, %p99
      %p102 = scmp.ne.s32.totalorder %s85, %s101
      %p103 = scmp.eq.s32.totalorder %s28, 0
      %p104 = por %p102, %p103
      %p105 = scmp.le.s32.totalorder 1, %s22
      %p106 = scmp.lt.s32.totalorder %s22, 3
      %p107 = pnand %p105, %p106
      %p108 = pneg %p107
      // Predicated region
      $region9: #{tpu_custom_call.1} parent=5 // pred_check
        _
      $region10: #{tpu_custom_call.1} parent=5 // pred_check_branch
        %110 = sbr.rel (%p107) target = $region12
      $region11: #{tpu_custom_call.1} parent=5 // pred_region
        %s111 = ssub.s32 %s22, 1
      $region12: #{tpu_custom_call.1} parent=5 // pred_fallthru
        _
      %p112 = scmp.lt.s32.totalorder %s22, 2
      // Predicated region
      $region13: #{tpu_custom_call.1} parent=5 // pred_check
        %p113 = pneg %p112
      $region14: #{tpu_custom_call.1} parent=5 // pred_check_branch
        %115 = sbr.rel (%p113) target = $region16
      $region15: #{tpu_custom_call.1} parent=5 // pred_region
        // Predicated region
        $region17: #{tpu_custom_call.1} parent=15 // pred_check
          %p116 = pneg %p65
        $region18: #{tpu_custom_call.1} parent=15 // pred_check_branch
          %118 = sbr.rel (%p116) target = $region20
        $region19: #{tpu_custom_call.1} parent=15 // pred_region
          %s119 = sand.u32 %s55, 1
          %s120 = scalar_lea.sflag [#allocation9], %s119
          %s121 = sand.u32 %s55, 1
          %s122 = smul.addr %s121, 8
          %s123 = scalar_lea.vmem [#allocation8], %s122
          %s124 = smul.u32 2, %s30
          %126 = vsyncadd %s120, 0
          %s127 = smul.addr %s31, 2
          %s128 = sadd.s32 %s124, %s127
          %s129 = smul.addr %s29, 2
          %s130 = sadd.s32 %s128, %s129
          %s131 = smul.addr %s130, 4
          %s132 = scalar_lea.hbm %s1, %s131
          %s134 = sshll.u32 %s132, 4
          %s135 = int_to_ptr.hbm [resolvable:$true] %s134
          %s136 = sshll.u32 %s123, 4
          %s137 = int_to_ptr.vmem [resolvable:$true] %s136
          %139 = dma.hbm_to_vmem [thread:$0]  %s135, 128, %s137, %s120
        $region20: #{tpu_custom_call.1} parent=15 // pred_fallthru
          _
      $region16: #{tpu_custom_call.1} parent=5 // pred_fallthru
        _
      %p140 = scmp.le.s32.totalorder 1, %s22
      %p141 = scmp.lt.s32.totalorder %s22, 3
      %p142 = pnand %p140, %p141
      %p143 = pneg %p142
      // Predicated region
      $region21: #{tpu_custom_call.1} parent=5 // pred_check
        _
      $region22: #{tpu_custom_call.1} parent=5 // pred_check_branch
        %145 = sbr.rel (%p142) target = $region24
      $region23: #{tpu_custom_call.1} parent=5 // pred_region
        %s146 = ssub.s32 %s22, 1
        %s147 = sand.u32 %s58, 1
        %s148 = scalar_lea.sflag [#allocation9], %s147
        %s149 = sand.u32 %s58, 1
        %s150 = smul.addr %s149, 8
        %s151 = scalar_lea.vmem [#allocation8], %s150
        // Predicated region
        $region25: #{tpu_custom_call.1} parent=23 // pred_check
          %p152 = pneg %p71
        $region26: #{tpu_custom_call.1} parent=23 // pred_check_branch
          %154 = sbr.rel (%p152) target = $region28
        $region27: #{tpu_custom_call.1} parent=23 // pred_region
          %156 = dma.done %s148, 128
        $region28: #{tpu_custom_call.1} parent=23 // pred_fallthru
          _
        %s157 = sand.u32 %s58, 1
        %s158 = scalar_lea.sflag [#allocation9], %s157
        %s159 = sand.u32 %s58, 1
        %s160 = smul.addr %s159, 8
        %s161 = scalar_lea.vmem [#allocation8], %s160
        %p162 = pneg %p71
        %p163 = pneg %p68
        %p164 = pneg %p97
        %p165 = pneg %p94
        %s166 = sand.u32 %s84, 1
        %s167 = scalar_lea.sflag [#allocation10], %s166
        %s168 = sand.u32 %s84, 1
        %s169 = smul.addr %s168, 8
        %s170 = scalar_lea.vmem [#allocation11], %s169
        %s171 = smul.u32 2, %s33
        %p172 = scmp.eq.s32.totalorder %s33, 0
        %p173 = scmp.eq.s32.totalorder %s34, 0
        %p174 = pnand %p172, %p173
        %p175 = pneg %p174
        // Predicated region
        $region29: #{tpu_custom_call.1} parent=23 // pred_check
          _
        $region30: #{tpu_custom_call.1} parent=23 // pred_check_branch
          %177 = sbr.rel (%p174) target = $region32
        $region31: #{tpu_custom_call.1} parent=23 // pred_region
          %v178 = vlaneseq
          %vm179 = vcmp.ge.s32.totalorder %v178, 0
          %vm180 = vcmp.lt.s32.totalorder %v178, 256
          %vm181 = vmand %vm179, %vm180
          %182 = vst.msk [vmem:[#allocation5] sm:$0x3] %vm181, 0.0
        $region32: #{tpu_custom_call.1} parent=23 // pred_fallthru
          _
        // Predicated region
        $region33: #{tpu_custom_call.1} parent=23 // pred_check
          %p183 = pneg %p173
        $region34: #{tpu_custom_call.1} parent=23 // pred_check_branch
          %185 = sbr.rel (%p183) target = $region36
        $region35: #{tpu_custom_call.1} parent=23 // pred_region
          %v186 = vlaneseq
          %vm187 = vcmp.ge.s32.totalorder %v186, 0
          %vm188 = vcmp.lt.s32.totalorder %v186, 256
          %vm189 = vmand %vm187, %vm188
          %190 = vst.msk [vmem:[#allocation2] sm:$0x3] %vm189, -inf
          %191 = vst.msk [vmem:[#allocation3] sm:$0x3] %vm189, 0.0
          %192 = vst.msk [vmem:[#allocation4] sm:$0x3] %vm189, 0.0
        $region36: #{tpu_custom_call.1} parent=23 // pred_fallthru
          _
        %v193 = vld [vmem:[%s151] sm:$0xff]
        %195 = vst [vmem:[#allocation1] ss:$2 sm:$0xff] %v193
        %v196 = vld.sshfl [vmem:[#allocation1] sm:$0xff pattern:$0x75316420]
        %v197 = vld.sshfl [vmem:[#allocation1 + $0x8] sm:$0xff pattern:$0x75316420]
        %vm200 = vcmask 1043456
        %v201 = vsel %vm200, %v196, -inf
        %v202 = vrot.slane %v201, 4
        %v203 = vmax.f32 %v201, %v202
        %v204 = vrot.slane %v203, 2
        %v205 = vmax.f32 %v203, %v204
        %v206 = vrot.slane %v205, 1
        %v207 = vmax.f32 %v205, %v206
        %v208 = vsel %vm200, %v197, -inf
        %v209 = vrot.slane %v208, 4
        %v210 = vmax.f32 %v208, %v209
        %v211 = vrot.slane %v210, 2
        %v212 = vmax.f32 %v210, %v211
        %v213 = vrot.slane %v212, 1
        %v214 = vmax.f32 %v212, %v213
        %v215 = vld [vmem:[#allocation2] sm:$0x3]
        %v218 = vrot.slane %v214, 7
        %vm219 = vcmask 1040384
        %v220 = vsel %vm219, %v207, %v218
        %v222 = vmax.f32 %v215, %v220
        %v223 = vsub.f32 %v215, %v222
        %v224 = vmul.f32 %v223, 1.442695
        %v225 = vpow.pop %v224
        %v227 = vperm.slane %v222, 0
        %v228 = vperm.slane %v222, 1
        %v229 = vrot.slane %v228, 4
        %v230 = vsel %vm200, %v227, %v229
        %v232 = vsub.f32 %v193, %v230
        %v233 = vmul.f32 %v232, 1.442695
        %v234 = vpow.pop %v233
        %v235 = vld [vmem:[#allocation3] sm:$0x3]
        %v236 = vmul.f32 %v225, %v235
        %238 = vst [vmem:[#allocation1] ss:$2 sm:$0xff] %v234
        %v239 = vld.sshfl [vmem:[#allocation1] sm:$0xff pattern:$0x75316420]
        %v240 = vld.sshfl [vmem:[#allocation1 + $0x8] sm:$0xff pattern:$0x75316420]
        %v243 = vsel %vm200, %v239, 0.0
        %v244 = vrot.slane %v243, 4
        %v245 = vadd.f32 %v243, %v244
        %v246 = vrot.slane %v245, 2
        %v247 = vadd.f32 %v245, %v246
        %v248 = vrot.slane %v247, 1
        %v249 = vadd.f32 %v247, %v248
        %v250 = vsel %vm200, %v240, 0.0
        %v251 = vrot.slane %v250, 4
        %v252 = vadd.f32 %v250, %v251
        %v253 = vrot.slane %v252, 2
        %v254 = vadd.f32 %v252, %v253
        %v255 = vrot.slane %v254, 1
        %v256 = vadd.f32 %v254, %v255
        %v259 = vrot.slane %v256, 7
        %v260 = vsel %vm219, %v249, %v259
        %v262 = vadd.f32 %v236, %v260
        %v263 = vlaneseq
        %vm264 = vcmp.ge.s32.totalorder %v263, 0
        %vm265 = vcmp.lt.s32.totalorder %v263, 256
        %vm266 = vmand %vm264, %vm265
        %267 = vst.msk [vmem:[#allocation3] sm:$0x3] %vm266, %v262
        %268 = vst.msk [vmem:[#allocation2] sm:$0x3] %vm266, %v222
        %s269 = sld [smem:[#allocation7 + %s32]]
        %p270 = scmp.gt.s32.totalorder %s269, 0
        %s271 = scalar_select %p270, %s269, 0
        %p272 = scmp.lt.s32.totalorder %s271, 3
        %s273 = scalar_select %p272, %s271, 3
        %s274 = smul.u32 %s34, 4
        %p275 = scmp.ge.s32.totalorder %s273, %s274
        %s276 = sadd.s32 %s34, 1
        %s277 = smul.u32 %s276, 4
        %p278 = scmp.lt.s32.totalorder %s273, %s277
        %p279 = pnand %p275, %p278
        %p280 = pneg %p279
        %s281 = ssub.s32 %s273, %s274
        %p282 = scmp.gt.s32.totalorder %s281, 0
        %s283 = scalar_select %p282, %s281, 0
        %p284 = scmp.lt.s32.totalorder %s283, 3
        %s285 = scalar_select %p284, %s283, 3
        %s286 = sshra.s32 %s285, 2
        %s287 = sand.u32 %s285, 3
        %s288 = sshra.s32 %s285, 2
        %s289 = sand.u32 %s285, 3
        %s290 = smul.u32 %s286, 2
        %s291 = smul.u32 %s290, 4
        %s292 = sadd.s32 %s291, %s289
        %s293 = scalar_lea.vmem %s151, %s292 [#allocation8]
        %v294 = vld [vmem:[%s293] ss:$4 sm:$0x3]
        %s295 = scalar_select %p280, 1, 0
        %v296 = vstv %s295
        %vm297 = vcmp.eq.s32.totalorder %v296, 1
        %v298 = vsel %vm297, %v294, 0.0
        %v299 = vadd.f32 %v298, 0.0
        %v300 = vld [vmem:[#allocation4] sm:$0x3]
        %v301 = vadd.f32 %v300, %v299
        %302 = vst.msk [vmem:[#allocation4] sm:$0x3] %vm266, %v301
        // Predicated region
        $region37: #{tpu_custom_call.1} parent=23 // pred_check
          %p303 = pneg %p173
        $region38: #{tpu_custom_call.1} parent=23 // pred_check_branch
          %305 = sbr.rel (%p303) target = $region40
        $region39: #{tpu_custom_call.1} parent=23 // pred_region
          %v306 = vld [vmem:[#allocation3] sm:$0x3]
          %v307 = vlog2.pop %v306
          %v308 = vmul.f32 %v307, 0.6931472
          %v309 = vld [vmem:[#allocation2] sm:$0x3]
          %v310 = vadd.f32 %v308, %v309
          %v311 = vadd.f32 %v310, 0.0
          %v312 = vld [vmem:[#allocation4] sm:$0x3]
          %v313 = vsub.f32 %v311, %v312
          %v314 = vld [vmem:[#allocation5] sm:$0x3]
          %v315 = vadd.f32 %v314, %v313
          %316 = vst.msk [vmem:[#allocation5] sm:$0x3] %vm266, %v315
        $region40: #{tpu_custom_call.1} parent=23 // pred_fallthru
          _
        // Predicated region
        $region41: #{tpu_custom_call.1} parent=23 // pred_check
          _
        $region42: #{tpu_custom_call.1} parent=23 // pred_check_branch
          %318 = sbr.rel (%p174) target = $region44
        $region43: #{tpu_custom_call.1} parent=23 // pred_region
          %v319 = vld [vmem:[#allocation5] sm:$0x3]
          %v321 = vperm.slane %v319, 0
          %v322 = vperm.slane %v319, 1
          %v325 = vsel %vm219, %v321, 0.0
          %v326 = vsel %vm219, %v322, 0.0
          %v327 = vadd.f32 %v325, %v326
          %328 = vadd.xlane.f32.xlu0 %v327
          %v329 = vpop.xlane.xlu0 %328
          %v330 = vrot.slane %v329, 4
          %v331 = vadd.f32 %v329, %v330
          %v332 = vrot.slane %v331, 2
          %v333 = vadd.f32 %v331, %v332
          %v334 = vrot.slane %v333, 1
          %v335 = vadd.f32 %v333, %v334
          %s336 = vtos %v335
          %v337 = vstv %s336
          %338 = vst [vmem:[%s170] sm:$0xff] %v337
        $region44: #{tpu_custom_call.1} parent=23 // pred_fallthru
          _
        %s339 = sand.u32 %s84, 1
        %s340 = scalar_lea.sflag [#allocation10], %s339
        %s341 = sand.u32 %s84, 1
        %s342 = smul.addr %s341, 8
        %s343 = scalar_lea.vmem [#allocation11], %s342
        // Predicated region
        $region45: #{tpu_custom_call.1} parent=23 // pred_check
          %p344 = pneg %p94
        $region46: #{tpu_custom_call.1} parent=23 // pred_check_branch
          %346 = sbr.rel (%p344) target = $region48
        $region47: #{tpu_custom_call.1} parent=23 // pred_region
          %348 = vsyncadd %s340, 0
          %s349 = smul.addr %s32, 8
          %s350 = scalar_lea.hbm %s2, %s349
          %s352 = sshll.u32 %s343, 4
          %s353 = int_to_ptr.vmem [resolvable:$true] %s352
          %s354 = sshll.u32 %s350, 4
          %s355 = int_to_ptr.hbm [resolvable:$true] %s354
          %357 = dma.vmem_to_hbm [thread:$0]  %s353, 128, %s355, %s340
        $region48: #{tpu_custom_call.1} parent=23 // pred_fallthru
          _
      $region24: #{tpu_custom_call.1} parent=5 // pred_fallthru
        _
      %p358 = scmp.le.s32.totalorder 2, %s22
      // Predicated region
      $region49: #{tpu_custom_call.1} parent=5 // pred_check
        %p359 = pneg %p358
      $region50: #{tpu_custom_call.1} parent=5 // pred_check_branch
        %361 = sbr.rel (%p359) target = $region52
      $region51: #{tpu_custom_call.1} parent=5 // pred_region
        %s362 = ssub.s32 %s22, 2
        // Predicated region
        $region53: #{tpu_custom_call.1} parent=51 // pred_check
          %p363 = pneg %p100
        $region54: #{tpu_custom_call.1} parent=51 // pred_check_branch
          %365 = sbr.rel (%p363) target = $region56
        $region55: #{tpu_custom_call.1} parent=51 // pred_region
          %s366 = sand.u32 %s85, 1
          %s367 = scalar_lea.sflag [#allocation10], %s366
          %s368 = sand.u32 %s85, 1
          %s369 = smul.addr %s368, 8
          %s370 = scalar_lea.vmem [#allocation11], %s369
          %372 = dma.done %s367, 128
        $region56: #{tpu_custom_call.1} parent=51 // pred_fallthru
          _
      $region52: #{tpu_custom_call.1} parent=5 // pred_fallthru
        _
    $region6: #{tpu_custom_call.1} parent=1 // loop_footer
      %s26 = sadd.s32 1, %s22
    $region7: #{tpu_custom_call.1} parent=1 // loop_footer_branch
      %21 = sbr.rel target = $region3
    $region8: #{tpu_custom_call.1} parent=1 // loop_exit
      _
    %373 = vsyncpa [#allocation9], 1
    %s374 = scalar_lea.sflag [#allocation9], 1
    %375 = vsyncpa %s374, 1
    %376 = vsyncpa [#allocation10], 1
    %s377 = scalar_lea.sflag [#allocation10], 1
    %378 = vsyncpa %s377, 1

</llo_original>
